<compile_context>
chip_gen: v6e
topology: v6e:2x2x1
jax: 0.10.0
libtpu: 0.0.40
codegen_flags: <defaults>
</compile_context>

<pallas_src>
import jax
import jax.numpy as jnp
from jax.experimental import pallas as pl
from jax.experimental.pallas import tpu as pltpu

_LANES = 128
_SUBLANES = 8
_CHUNK = _SUBLANES * _LANES                  # 1024 elements
_DEFAULT_BLOCK_BYTES = 2 * 1024 * 1024       # ~2 MiB of raw input per block
_VMEM_LIMIT_BYTES = 32 * 1024 * 1024         # safe on v5e/v6e/v7x


def _tensorcores_per_chip() -> int:
    """Use a 2-way core split only on multi-TensorCore chips (v7x)."""
    try:
        kind = jax.devices()[0].device_kind.lower()
    except Exception:
        return 1
    return 2 if ("v7" in kind or "tpu7" in kind) else 1


def _make_mse_kernel(block_rows, num_blocks, bpc, valid_rows_last, needs_clamp):
    needs_row_mask = valid_rows_last != block_rows

    def kernel(x_ref, y_ref, o_ref, acc_ref):
        c = pl.program_id(0)          # core / parallel axis
        i = pl.program_id(1)          # reduction axis (sequential per core)
        logical_block = c * bpc + i

        @pl.when(i == 0)
        def _init():
            acc_ref[...] = jnp.zeros_like(acc_ref)

        def _accumulate(mask_rows):
            d = x_ref[...].astype(jnp.float32) - y_ref[...].astype(jnp.float32)
            sq = d * d
            if mask_rows:
                row = jax.lax.broadcasted_iota(
                    jnp.int32, (block_rows, _LANES), 0)
                # select (not multiply-by-mask): garbage read past the array
                # end may be NaN/Inf and must not propagate.
                sq = jnp.where(row < valid_rows_last, sq, 0.0)
            # Fold (block_rows, 128) -> (8, 128): pure vreg-wise VPU adds,
            # no XLU, single-vreg accumulator.
            acc_ref[...] += jnp.sum(
                sq.reshape(-1, _SUBLANES, _LANES), axis=0)

        if needs_row_mask:
            # Interior blocks: unmasked. (Duplicated clamped blocks have
            # logical_block >= num_blocks and match neither branch.)
            @pl.when(logical_block < num_blocks - 1)
            def _interior():
                _accumulate(False)

            # Only the logical last block pays the row mask.
            @pl.when(logical_block == num_blocks - 1)
            def _last():
                _accumulate(True)
        elif needs_clamp:
            # Skip duplicated clamped blocks entirely.
            @pl.when(logical_block < num_blocks)
            def _valid():
                _accumulate(False)
        else:
            _accumulate(False)

        @pl.when(i == pl.num_programs(1) - 1)
        def _epilogue():
            o_ref[...] = acc_ref[...].reshape(1, _SUBLANES, _LANES)

    return kernel


def similarity_loss(x: jax.Array, y: jax.Array, *,
                    max_block_bytes: int = _DEFAULT_BLOCK_BYTES) -> jax.Array:
    """MSE loss with mean reduction, computed in a Pallas TPU kernel."""
    assert x.shape == y.shape, "input and target must have the same shape"
    total_n = x.size

    xf = jnp.reshape(x, (-1,))
    yf = jnp.reshape(y, (-1,))

    main_n = (total_n // _CHUNK) * _CHUNK
    tail_sse = jnp.zeros((), jnp.float32)

    if main_n == 0:
        # Tiny input: pad a single 1024-element chunk (identical zero pads of
        # x and y cancel, contributing exactly 0 to the SSE).
        pad = _CHUNK - total_n
        xf = jnp.pad(xf, (0, pad))
        yf = jnp.pad(yf, (0, pad))
        main_n = _CHUNK
    elif main_n != total_n:
        # Ragged tail (< 1024 elements): reduce it in plain JAX (negligible)
        # and stream only the aligned prefix through the kernel.
        # TODO(synk): the xf[:main_n] slice still materializes one copy of
        # each input in HBM; unavoidable without 1-D block layout tricks.
        xt = xf[main_n:].astype(jnp.float32)
        yt = yf[main_n:].astype(jnp.float32)
        tail_sse = jnp.sum((xt - yt) ** 2)
        xf = xf[:main_n]
        yf = yf[:main_n]
    # else: total_n is a multiple of 1024 -> reshape below is free (no copy).

    rows = main_n // _LANES                  # multiple of 8
    x2d = xf.reshape(rows, _LANES)
    y2d = yf.reshape(rows, _LANES)

    # Size blocks by bytes so bf16/int8 inputs keep the same pipeline depth;
    # keep block_rows a multiple of 32 for packed-dtype sublane tiling.
    itemsize = jnp.dtype(x.dtype).itemsize
    cap_rows = max(32, (max_block_bytes // (_LANES * itemsize)) // 32 * 32)
    block_rows = min(cap_rows, rows)         # == rows (mult of 8) if small
    num_blocks = pl.cdiv(rows, block_rows)

    num_cores = _tensorcores_per_chip()
    if num_blocks < num_cores:
        num_cores = 1
    bpc = pl.cdiv(num_blocks, num_cores)     # blocks per core
    needs_clamp = num_cores * bpc != num_blocks
    valid_rows_last = rows - (num_blocks - 1) * block_rows

    if needs_clamp:
        def in_map(c, i):
            return (jnp.minimum(c * bpc + i, num_blocks - 1), 0)
    else:
        def in_map(c, i):
            return (c * bpc + i, 0)

    kernel = _make_mse_kernel(block_rows, num_blocks, bpc, valid_rows_last,
                              needs_clamp)

    cost = pl.CostEstimate(
        flops=3 * total_n,
        transcendentals=0,
        bytes_accessed=2 * main_n * itemsize
        + num_cores * _SUBLANES * _LANES * 4,
    )

    partials = pl.pallas_call(
        kernel,
        out_shape=jax.ShapeDtypeStruct((num_cores, _SUBLANES, _LANES),
                                       jnp.float32),
        grid_spec=pltpu.PrefetchScalarGridSpec(
            num_scalar_prefetch=0,
            grid=(num_cores, bpc),
            in_specs=[
                pl.BlockSpec((block_rows, _LANES), in_map),
                pl.BlockSpec((block_rows, _LANES), in_map),
            ],
            out_specs=pl.BlockSpec((1, _SUBLANES, _LANES),
                                   lambda c, i: (c, 0, 0)),
            scratch_shapes=[pltpu.VMEM((_SUBLANES, _LANES), jnp.float32)],
        ),
        compiler_params=pltpu.CompilerParams(
            dimension_semantics=("parallel", "arbitrary"),
            vmem_limit_bytes=_VMEM_LIMIT_BYTES,
        ),
        cost_estimate=cost,
    )(x2d, y2d)

    # Final tiny reduce (num_cores * 1024 f32) + mean scale done in XLA.
    sse = jnp.sum(partials) + tail_sse
    out_dtype = jnp.result_type(x.dtype, y.dtype)
    if not jnp.issubdtype(out_dtype, jnp.floating):
        out_dtype = jnp.float32
    return (sse / total_n).astype(out_dtype)


if __name__ == "__main__":
    key = jax.random.PRNGKey(0)
    k1, k2, k3, k4, k5, k6, k7, k8 = jax.random.split(key, 8)

    # 1) NCHW-like shape consistent with a face-anti-spoof depth-map loss;
    #    aligned element count -> zero-copy single-block path.
    x = jax.random.normal(k1, (2, 4, 16, 16), dtype=jnp.float32)
    t = jax.random.normal(k2, (2, 4, 16, 16), dtype=jnp.float32)
    loss = jax.block_until_ready(similarity_loss(x, t))
    ref = jnp.mean((x - t) ** 2)
    assert jnp.allclose(loss, ref, rtol=1e-5, atol=1e-6), (loss, ref)

    # 2) Force tiny blocks to exercise the multi-block + partial-last-block
    #    (row-masked) path at a small shape.
    x2 = jax.random.normal(k3, (5, 1024), dtype=jnp.float32)
    t2 = jax.random.normal(k4, (5, 1024), dtype=jnp.float32)
    loss2 = jax.block_until_ready(
        similarity_loss(x2, t2, max_block_bytes=32 * _LANES * 4))
    ref2 = jnp.mean((x2 - t2) ** 2)
    assert jnp.allclose(loss2, ref2, rtol=1e-5, atol=1e-6), (loss2, ref2)

    # 3) Odd block count (3 blocks) -> also exercises the clamped/duplicated
    #    block guard on 2-TensorCore chips.
    x3 = jax.random.normal(k5, (9, 1024), dtype=jnp.float32)
    t3 = jax.random.normal(k6, (9, 1024), dtype=jnp.float32)
    loss3 = jax.block_until_ready(
        similarity_loss(x3, t3, max_block_bytes=32 * _LANES * 4))
    ref3 = jnp.mean((x3 - t3) ** 2)
    assert jnp.allclose(loss3, ref3, rtol=1e-5, atol=1e-6), (loss3, ref3)

    # 4) Ragged element count (not a multiple of 8*128): JAX tail path.
    x4 = jax.random.normal(k7, (3, 5, 7, 11), dtype=jnp.float32)
    t4 = jax.random.normal(k8, (3, 5, 7, 11), dtype=jnp.float32)
    loss4 = jax.block_until_ready(similarity_loss(x4, t4))
    ref4 = jnp.mean((x4 - t4) ** 2)
    assert jnp.allclose(loss4, ref4, rtol=1e-5, atol=1e-6), (loss4, ref4)

    print("KERNEL_OK")
</pallas_src>

<mosaic_0001>
module attributes {stable_mosaic.version = 11 : i64} {
  func.func @kernel(%arg0: i32, %arg1: i32, %arg2: memref<16x128xf32, #tpu.memory_space<vmem>>, %arg3: memref<16x128xf32, #tpu.memory_space<vmem>>, %arg4: memref<1x8x128xf32, #tpu.memory_space<vmem>>, %arg5: memref<8x128xf32, #tpu.memory_space<vmem>>) attributes {dimension_semantics = [#tpu.dimension_semantics<parallel>, #tpu.dimension_semantics<arbitrary>], iteration_bounds = array<i64: 1, 1>, scalar_prefetch = 0 : i64, scratch_operands = 1 : i64, tpu.core_type = #tpu.core_type<tc>, window_params = [{transform_indices = @transform_0, window_bounds = array<i64: 16, 128>}, {transform_indices = @transform_1, window_bounds = array<i64: 16, 128>}, {transform_indices = @transform_2, window_bounds = array<i64: 1, 8, 128>}]} {
    %c0_i32 = arith.constant 0 : i32
    %0 = arith.cmpi eq, %arg1, %c0_i32 : i32
    %1 = arith.extui %0 : i1 to i32
    %c0_i32_0 = arith.constant 0 : i32
    %2 = arith.cmpi ne, %1, %c0_i32_0 : i32
    scf.if %2 {
      %cst_10 = arith.constant 0.000000e+00 : f32
      %15 = vector.broadcast %cst_10 : f32 to vector<8x128xf32>
      %c0_11 = arith.constant 0 : index
      %c0_12 = arith.constant 0 : index
      %16 = vector.load %arg5[%c0_11, %c0_12] : memref<8x128xf32, #tpu.memory_space<vmem>>, vector<8x128xf32>
      tpu.vector_store %arg5[%c0_11, %c0_12], %15 {strides = array<i32>} : memref<8x128xf32, #tpu.memory_space<vmem>>, vector<8x128xf32>,
    } else {
    }
    %c0 = arith.constant 0 : index
    %c0_1 = arith.constant 0 : index
    %3 = vector.load %arg2[%c0, %c0_1] : memref<16x128xf32, #tpu.memory_space<vmem>>, vector<16x128xf32>
    %c0_2 = arith.constant 0 : index
    %c0_3 = arith.constant 0 : index
    %4 = vector.load %arg3[%c0_2, %c0_3] : memref<16x128xf32, #tpu.memory_space<vmem>>, vector<16x128xf32>
    %5 = arith.subf %3, %4 : vector<16x128xf32>
    %6 = arith.mulf %5, %5 : vector<16x128xf32>
    %c0_4 = arith.constant 0 : index
    %c0_5 = arith.constant 0 : index
    %7 = vector.load %arg5[%c0_4, %c0_5] : memref<8x128xf32, #tpu.memory_space<vmem>>, vector<8x128xf32>
    %8 = vector.shape_cast %6 : vector<16x128xf32> to vector<2x8x128xf32>
    %cst = arith.constant dense<0.000000e+00> : vector<8x128xf32>
    %9 = vector.multi_reduction <add>, %8, %cst [0] : vector<2x8x128xf32> to vector<8x128xf32>
    %10 = arith.addf %7, %9 : vector<8x128xf32>
    %c0_6 = arith.constant 0 : index
    %c0_7 = arith.constant 0 : index
    %11 = vector.load %arg5[%c0_6, %c0_7] : memref<8x128xf32, #tpu.memory_space<vmem>>, vector<8x128xf32>
    tpu.vector_store %arg5[%c0_6, %c0_7], %10 {strides = array<i32>} : memref<8x128xf32, #tpu.memory_space<vmem>>, vector<8x128xf32>,
    %c0_i32_8 = arith.constant 0 : i32
    %12 = arith.cmpi eq, %arg1, %c0_i32_8 : i32
    %13 = arith.extui %12 : i1 to i32
    %c0_i32_9 = arith.constant 0 : i32
    %14 = arith.cmpi ne, %13, %c0_i32_9 : i32
    scf.if %14 {
      %c0_10 = arith.constant 0 : index
      %c0_11 = arith.constant 0 : index
      %15 = vector.load %arg5[%c0_10, %c0_11] : memref<8x128xf32, #tpu.memory_space<vmem>>, vector<8x128xf32>
      %16 = vector.shape_cast %15 : vector<8x128xf32> to vector<1x8x128xf32>
      %c0_12 = arith.constant 0 : index
      %c0_13 = arith.constant 0 : index
      %c0_14 = arith.constant 0 : index
      %17 = vector.load %arg4[%c0_12, %c0_13, %c0_14] : memref<1x8x128xf32, #tpu.memory_space<vmem>>, vector<1x8x128xf32>
      tpu.vector_store %arg4[%c0_12, %c0_13, %c0_14], %16 {strides = array<i32>} : memref<1x8x128xf32, #tpu.memory_space<vmem>>, vector<1x8x128xf32>,
    } else {
    }
    return
  }
  func.func @transform_0(%arg0: i32, %arg1: i32) -> (i32, i32) {
    %c1_i32 = arith.constant 1 : i32
    %0 = arith.muli %arg0, %c1_i32 : i32
    %1 = arith.addi %0, %arg1 : i32
    %c0_i32 = arith.constant 0 : i32
    %c0_i32_0 = arith.constant 0 : i32
    return %1, %c0_i32 : i32, i32
  }
  func.func @transform_1(%arg0: i32, %arg1: i32) -> (i32, i32) {
    %c1_i32 = arith.constant 1 : i32
    %0 = arith.muli %arg0, %c1_i32 : i32
    %1 = arith.addi %0, %arg1 : i32
    %c0_i32 = arith.constant 0 : i32
    %c0_i32_0 = arith.constant 0 : i32
    return %1, %c0_i32 : i32, i32
  }
  func.func @transform_2(%arg0: i32, %arg1: i32) -> (i32, i32, i32) {
    %c0_i32 = arith.constant 0 : i32
    %c0_i32_0 = arith.constant 0 : i32
    %c0_i32_1 = arith.constant 0 : i32
    return %arg0, %c0_i32, %c0_i32_0 : i32, i32, i32
  }
}

</mosaic_0001>

<llo_original>
// kernel: tpu_custom_call.1
$region0: #{tpu_custom_call.1}
  #allocation0 [shape = 'u32[]', space=smem, size = 0x4, offset = 0x4, fixed_abs, tag = 'smem constant byte address 0x4 - core index']
  #allocation1 [shape = 'u32[144,128]{1,0:T(1,128)}', space=vmem, size = 0x12000, scoped, tag = 'internal scratch']
  #allocation2 [shape = 'f32[8,128]{1,0:T(8,128)}', space=vmem, size = 0x1000, scoped, tag = 'scratch operand']
  %s0 = inlined_call_operand.hbm [shape: f32[16,128], index: 0, kind: input, shape index: {}]
  %s1 = inlined_call_operand.hbm [shape: f32[16,128], index: 1, kind: input, shape index: {}]
  %s2 = inlined_call_operand.hbm [shape: f32[1,8,128], index: 2, kind: output, shape index: {}]
  %s3 = sld [smem:[#allocation0]]
  $region34: #{tpu_custom_call.1} parent=0
    _
  %s5 = ssub.s32 1, %s3
  %s6 = scalar_select 0, %s5, %s3
  $region1: #{tpu_custom_call.1} parent=0
    #allocation3 [shape = 'u8[8192]{0}', space=vmem, size = 0x2000, scoped, tag = 'input window, operand 0, single buffered']
    #allocation4 [shape = 's32[1]{0}', space=sflag, size = 0x4, scoped, tag = 'scoped memory for tpu_custom_call.1']
    #allocation5 [shape = 's32[1]{0}', space=sflag, size = 0x4, scoped, tag = 'scoped memory for tpu_custom_call.1']
    #allocation6 [shape = 'u8[8192]{0}', space=vmem, size = 0x2000, scoped, tag = 'input window, operand 1, single buffered']
    #allocation7 [shape = 's32[1]{0}', space=sflag, size = 0x4, scoped, tag = 'scoped memory for tpu_custom_call.1']
    #allocation8 [shape = 'u8[4096]{0}', space=vmem, size = 0x1000, scoped, tag = 'output window, operand 0, single buffered']
    %7 = vsyncpa [#allocation4], 0
    %8 = vsyncpa [#allocation7], 0
    %9 = vsyncpa [#allocation5], 0
    // Predicated region
    $region2: #{tpu_custom_call.1} parent=1 // pred_check
      _
    $region3: #{tpu_custom_call.1} parent=1 // pred_check_branch
      %11 = sbr.rel (0) target = $region5
    $region4: #{tpu_custom_call.1} parent=1 // pred_region
      %s12 = sadd.s32 0, 0
      %s13 = smul.u32 2, %s12
      %s15 = ssub.s32 256, 256
      %16 = vsyncadd [#allocation4], %s15
      %s17 = smul.addr %s13, 128
      %s18 = scalar_lea.hbm %s0, %s17
      %s19 = sshll.u32 [#allocation3], 4
      %s20 = int_to_ptr.vmem [resolvable:$true] %s19
      %25 = dma.hbm_to_vmem [thread:$0]  %s18, 256, %s20, [#allocation4], 128, 128, 8
    $region5: #{tpu_custom_call.1} parent=1 // pred_fallthru
      _
    // Predicated region
    $region6: #{tpu_custom_call.1} parent=1 // pred_check
      _
    $region7: #{tpu_custom_call.1} parent=1 // pred_check_branch
      %27 = sbr.rel (0) target = $region9
    $region8: #{tpu_custom_call.1} parent=1 // pred_region
      %s28 = sadd.s32 0, 0
      %s29 = smul.u32 2, %s28
      %s31 = ssub.s32 256, 256
      %32 = vsyncadd [#allocation7], %s31
      %s33 = smul.addr %s29, 128
      %s34 = scalar_lea.hbm %s1, %s33
      %s35 = sshll.u32 [#allocation6], 4
      %s36 = int_to_ptr.vmem [resolvable:$true] %s35
      %41 = dma.hbm_to_vmem [thread:$0]  %s34, 256, %s36, [#allocation7], 128, 128, 8
    $region9: #{tpu_custom_call.1} parent=1 // pred_fallthru
      _
    // Predicated region
    $region10: #{tpu_custom_call.1} parent=1 // pred_check
      _
    $region11: #{tpu_custom_call.1} parent=1 // pred_check_branch
      %43 = sbr.rel (0) target = $region13
    $region12: #{tpu_custom_call.1} parent=1 // pred_region
      %44 = dma.done [#allocation4], 256
    $region13: #{tpu_custom_call.1} parent=1 // pred_fallthru
      _
    // Predicated region
    $region14: #{tpu_custom_call.1} parent=1 // pred_check
      _
    $region15: #{tpu_custom_call.1} parent=1 // pred_check_branch
      %46 = sbr.rel (0) target = $region17
    $region16: #{tpu_custom_call.1} parent=1 // pred_region
      %47 = dma.done [#allocation7], 256
    $region17: #{tpu_custom_call.1} parent=1 // pred_fallthru
      _
    %s48 = sadd.s32 0, 0
    %s49 = smul.u32 2, %s48
    %s50 = sadd.s32 0, 0
    %s51 = smul.u32 2, %s50
    %p52 = scmp.eq.s32.totalorder 0, 0
    // Predicated region
    $region18: #{tpu_custom_call.1} parent=1 // pred_check
      %p53 = pneg %p52
    $region19: #{tpu_custom_call.1} parent=1 // pred_check_branch
      %55 = sbr.rel (%p53) target = $region21
    $region20: #{tpu_custom_call.1} parent=1 // pred_region
      %56 = vst [vmem:[#allocation2] sm:$0xff] 0.0
    $region21: #{tpu_custom_call.1} parent=1 // pred_fallthru
      _
    %v57 = vld [vmem:[#allocation3] sm:$0xff]
    %v58 = vld [vmem:[#allocation3 + $0x8] sm:$0xff]
    %v59 = vld [vmem:[#allocation6] sm:$0xff]
    %v60 = vld [vmem:[#allocation6 + $0x8] sm:$0xff]
    %v61 = vsub.f32 %v57, %v59
    %v62 = vsub.f32 %v58, %v60
    %v63 = vmul.f32 %v61, %v61
    %v64 = vmul.f32 %v62, %v62
    %v65 = vld [vmem:[#allocation2] sm:$0xff]
    %v66 = vadd.f32 %v63, %v64
    %v67 = vadd.f32 %v65, %v66
    %68 = vst [vmem:[#allocation2] sm:$0xff] %v67
    // Predicated region
    $region22: #{tpu_custom_call.1} parent=1 // pred_check
      %p69 = pneg %p52
    $region23: #{tpu_custom_call.1} parent=1 // pred_check_branch
      %71 = sbr.rel (%p69) target = $region25
    $region24: #{tpu_custom_call.1} parent=1 // pred_region
      %v72 = vld [vmem:[#allocation2] sm:$0xff]
      %73 = vst [vmem:[#allocation8] sm:$0xff] %v72
    $region25: #{tpu_custom_call.1} parent=1 // pred_fallthru
      _
    // Predicated region
    $region26: #{tpu_custom_call.1} parent=1 // pred_check
      _
    $region27: #{tpu_custom_call.1} parent=1 // pred_check_branch
      %75 = sbr.rel (0) target = $region29
    $region28: #{tpu_custom_call.1} parent=1 // pred_region
      %s77 = ssub.s32 128, 128
      %78 = vsyncadd [#allocation5], %s77
      %s80 = sshll.u32 [#allocation8], 4
      %s81 = int_to_ptr.vmem [resolvable:$true] %s80
      %83 = dma.vmem_to_hbm [thread:$0]  %s81, 128, %s2, [#allocation5]
    $region29: #{tpu_custom_call.1} parent=1 // pred_fallthru
      _
    // Predicated region
    $region30: #{tpu_custom_call.1} parent=1 // pred_check
      _
    $region31: #{tpu_custom_call.1} parent=1 // pred_check_branch
      %85 = sbr.rel (0) target = $region33
    $region32: #{tpu_custom_call.1} parent=1 // pred_region
      %86 = dma.done [#allocation5], 128
    $region33: #{tpu_custom_call.1} parent=1 // pred_fallthru
      _
    %87 = vsyncpa [#allocation4], 1
    %88 = vsyncpa [#allocation7], 1
    %89 = vsyncpa [#allocation5], 1

</llo_original>
